<compile_context>
chip_gen: v7x
topology: tpu7x:2x2x1
jax: 0.10.0
libtpu: 0.0.40
codegen_flags: <defaults>
</compile_context>

<pallas_src>
import functools

import jax
import jax.numpy as jnp
from jax import lax
from jax.experimental import pallas as pl
from jax.experimental.pallas import tpu as pltpu

EPS = 1e-5                            # nn.BatchNorm2d default eps
TM_MAX = 8192                         # hard cap on the M (lane) tile width
TM_DATA_BUDGET = 12 * 1024 * 1024     # double-buffered tile bytes per grid step
VMEM_LIMIT = 32 * 1024 * 1024         # explicit scoped-VMEM limit (portable)


def _round_up(x, m):
    return (x + m - 1) // m * m


def _round_down(x, m):
    return x // m * m


# ---------------------------- Pallas kernels ---------------------------------
def _conv_stats_kernel(w_ref, p_ref, y_ref, stats_ref, *, tm, m_valid, needs_mask):
    """Pass 1: y = W^T @ P_tile (MXU, f32 acc) -> bf16 y tile + partial BN stats.

    stats block layout (lane-dense (Cout, 128) store, no masked vst):
      lane 0 = per-channel sum, lane 1 = per-channel sum of squares, rest 0.
    """
    y = jnp.dot(w_ref[...], p_ref[...], preferred_element_type=jnp.float32)
    y_ref[...] = y.astype(y_ref.dtype)

    if needs_mask:
        # Ragged tail tile: columns past the true M hold unspecified data
        # (Pallas clamps the input DMA); exclude them from the statistics with
        # a select (robust even if the garbage is NaN/Inf).
        col = pl.program_id(0) * tm + lax.broadcasted_iota(jnp.int32, y.shape, 1)
        valid = col < m_valid
        ys = jnp.where(valid, y, 0.0)
        yq = jnp.where(valid, y * y, 0.0)
    else:
        ys = y
        yq = y * y

    s = jnp.sum(ys, axis=1, keepdims=True)                      # (Cout, 1)
    q = jnp.sum(yq, axis=1, keepdims=True)                      # (Cout, 1)
    lane = lax.broadcasted_iota(jnp.int32, stats_ref.shape, 1)  # (Cout, 128)
    stats_ref[...] = jnp.where(lane == 0, s, jnp.where(lane == 1, q, 0.0))


def _bn_relu_kernel(scale_ref, shift_ref, y_ref, o_ref):
    """Pass 2: pure elementwise folded BN (scale*y + shift) + ReLU, bf16 out."""
    y = y_ref[...].astype(jnp.float32)
    o_ref[...] = jnp.maximum(y * scale_ref[...] + shift_ref[...], 0.0).astype(o_ref.dtype)


# ------------------------------ glue / wrapper --------------------------------
def _im2col_cnhw_k3_s2_p1(x_cnhw):
    """3x3 / stride-2 / pad-1 patches, channel-major, built in the input dtype
    (bf16). Returns P of shape (K, M), K = 9*Cin ((ky,kx) major, cin minor),
    M = N*Ho*Wo, plus the output spatial shape."""
    C, N, H, W = x_cnhw.shape
    Ho, Wo = (H + 1) // 2, (W + 1) // 2
    xp = jnp.pad(x_cnhw, ((0, 0), (0, 0), (1, 1), (1, 1)))
    cols = []
    for ky in range(3):
        for kx in range(3):
            cols.append(
                lax.slice(
                    xp,
                    (0, 0, ky, kx),
                    (C, N, ky + 2 * (Ho - 1) + 1, kx + 2 * (Wo - 1) + 1),
                    (1, 1, 2, 2),
                )
            )  # each (C, N, Ho, Wo)
    patches = jnp.stack(cols, axis=0)                      # (9, C, N, Ho, Wo)
    return patches.reshape(9 * C, N * Ho * Wo), (N, Ho, Wo)


def _conv_bn_relu_stage(x_cnhw, w_oihw, gamma, beta):
    """One Conv(3x3,s2,p1) + BatchNorm(train) + ReLU stage, channel-major bf16
    in / channel-major bf16 out. The conv bias is cancelled by the BN mean
    subtraction and is therefore not an input to the kernels."""
    Cout, Cin = w_oihw.shape[0], w_oihw.shape[1]
    K = 9 * Cin

    p, (N, Ho, Wo) = _im2col_cnhw_k3_s2_p1(x_cnhw)         # (K, M) bf16
    M = p.shape[1]

    # MXU weight operand, K order matches P ((ky,kx) major, cin minor).
    # NOTE: K is left unpadded (multiple-of-16 sublane padding would need an
    # extra materialization of P; Mosaic handles the ragged layout).
    w2d = (jnp.transpose(w_oihw, (0, 2, 3, 1))
           .reshape(Cout, K).astype(jnp.bfloat16))

    # M-tile sized against a VMEM budget: 2 buffers each for the streamed P
    # tile (K*tm*2 B) and the y tile (Cout*tm*2 B); multiple of 128 lanes.
    tm = TM_DATA_BUDGET // (4 * (K + Cout))
    tm = max(128, min(TM_MAX, _round_down(tm, 128)))
    if M <= tm:
        tm = M                                             # one block == full array
    grid_m = pl.cdiv(M, tm)
    grid = (grid_m,)
    needs_mask = (M % tm) != 0

    w_spec = pl.BlockSpec((Cout, K), lambda i: (0, 0))         # resident
    p_spec = pl.BlockSpec((K, tm), lambda i: (0, i))           # streamed over M
    y_spec = pl.BlockSpec((Cout, tm), lambda i: (0, i))        # streamed over M
    stats_spec = pl.BlockSpec((Cout, 128), lambda i: (0, i))   # per-tile partials
    cparams = pltpu.CompilerParams(dimension_semantics=("parallel",),
                                   vmem_limit_bytes=VMEM_LIMIT)

    # --- pass 1: conv matmul -> y (bf16) + per-tile partial statistics -------
    flops = 2 * M * K * Cout
    y_flat, stats = pl.pallas_call(
        functools.partial(_conv_stats_kernel, tm=tm, m_valid=M, needs_mask=needs_mask),
        out_shape=(jax.ShapeDtypeStruct((Cout, M), jnp.bfloat16),
                   jax.ShapeDtypeStruct((Cout, grid_m * 128), jnp.float32)),
        grid=grid,
        in_specs=[w_spec, p_spec],
        out_specs=(y_spec, stats_spec),
        compiler_params=cparams,
        cost_estimate=pl.CostEstimate(
            flops=flops, transcendentals=0,
            bytes_accessed=p.size * 2 + w2d.size * 2 + Cout * M * 2
                           + Cout * grid_m * 128 * 4),
    )(w2d, p)

    # Tiny per-channel reduction / BN folding in plain JAX (Cout values).
    parts = stats.reshape(Cout, grid_m, 128)
    s = jnp.sum(parts[:, :, 0], axis=1)
    q = jnp.sum(parts[:, :, 1], axis=1)
    mean = s / M
    # Single-pass E[y^2]-E[y]^2 in f32; clamp guards tiny negative rounding.
    # (A shifted/Welford formulation would be safer for non-normalized inputs.)
    var = jnp.maximum(q / M - mean * mean, 0.0)
    scale = (gamma.astype(jnp.float32) * lax.rsqrt(var + EPS)).reshape(Cout, 1)
    shift = beta.astype(jnp.float32).reshape(Cout, 1) - scale * mean.reshape(Cout, 1)

    # --- pass 2: elementwise folded BN + ReLU over y (no matmul recompute) ---
    c_spec = pl.BlockSpec((Cout, 1), lambda i: (0, 0))         # per-channel scalars
    out = pl.pallas_call(
        _bn_relu_kernel,
        out_shape=jax.ShapeDtypeStruct((Cout, M), jnp.bfloat16),
        grid=grid,
        in_specs=[c_spec, c_spec, y_spec],
        out_specs=y_spec,
        compiler_params=cparams,
        cost_estimate=pl.CostEstimate(
            flops=2 * Cout * M, transcendentals=0,
            bytes_accessed=2 * Cout * M * 2 + 2 * Cout * 4),
    )(scale, shift, y_flat)

    return out.reshape(Cout, N, Ho, Wo)


def conv_stem_forward(x_nchw, params):
    """ConvStem.forward (training-mode BatchNorm). NCHW in / NCHW out (f32).
    Note: conv biases b1/b2 are accepted but unused (cancelled exactly by BN)."""
    x = jnp.transpose(x_nchw, (1, 0, 2, 3)).astype(jnp.bfloat16)   # NCHW -> CNHW bf16
    y = _conv_bn_relu_stage(x, params["w1"], params["g1"], params["beta1"])
    y = _conv_bn_relu_stage(y, params["w2"], params["g2"], params["beta2"])
    return jnp.transpose(y, (1, 0, 2, 3)).astype(jnp.float32)      # CNHW -> NCHW


# ---- pure-JAX reference (numerical sanity check; includes the conv bias) ----
def _ref_stage(x_nchw, w, b, g, beta):
    y = lax.conv_general_dilated(
        x_nchw, w, window_strides=(2, 2), padding=((1, 1), (1, 1)),
        dimension_numbers=("NCHW", "OIHW", "NCHW"))
    y = y + b.reshape(1, -1, 1, 1)
    mu = jnp.mean(y, axis=(0, 2, 3), keepdims=True)
    var = jnp.mean((y - mu) ** 2, axis=(0, 2, 3), keepdims=True)
    y = g.reshape(1, -1, 1, 1) * (y - mu) / jnp.sqrt(var + EPS) + beta.reshape(1, -1, 1, 1)
    return jnp.maximum(y, 0.0)


def conv_stem_reference(x_nchw, p):
    y = _ref_stage(x_nchw, p["w1"], p["b1"], p["g1"], p["beta1"])
    return _ref_stage(y, p["w2"], p["b2"], p["g2"], p["beta2"])


if __name__ == "__main__":
    # Small shapes: batch=2, in_channels=4, spatial=16, out_channels=32
    N, Cin, H, W = 2, 4, 16, 16
    Cout = 32
    Cmid = Cout // 2

    key = jax.random.PRNGKey(0)
    ks = jax.random.split(key, 9)
    x = jax.random.normal(ks[0], (N, Cin, H, W), dtype=jnp.float32)

    params = {
        "w1": jax.random.normal(ks[1], (Cmid, Cin, 3, 3), jnp.float32) * (1.0 / (9 * Cin) ** 0.5),
        "b1": jax.random.normal(ks[2], (Cmid,), jnp.float32) * 0.1,
        "g1": 1.0 + 0.1 * jax.random.normal(ks[3], (Cmid,), jnp.float32),
        "beta1": 0.1 * jax.random.normal(ks[4], (Cmid,), jnp.float32),
        "w2": jax.random.normal(ks[5], (Cout, Cmid, 3, 3), jnp.float32) * (1.0 / (9 * Cmid) ** 0.5),
        "b2": jax.random.normal(ks[6], (Cout,), jnp.float32) * 0.1,
        "g2": 1.0 + 0.1 * jax.random.normal(ks[7], (Cout,), jnp.float32),
        "beta2": 0.1 * jax.random.normal(ks[8], (Cout,), jnp.float32),
    }

    fwd = jax.jit(conv_stem_forward)
    out = jax.block_until_ready(fwd(x, params))
    assert out.shape == (N, Cout, H // 4, W // 4), out.shape

    ref = jax.block_until_ready(conv_stem_reference(x, params))
    # bf16 MXU operands and bf16 intermediate storage -> loosened tolerance.
    assert jnp.allclose(out, ref, rtol=4e-2, atol=4e-2), float(jnp.max(jnp.abs(out - ref)))

    print("KERNEL_OK")
</pallas_src>

<mosaic_0001>
module attributes {stable_mosaic.version = 11 : i64} {
  func.func @_conv_stats_kernel(%arg0: i32, %arg1: memref<16x36xbf16, #tpu.memory_space<vmem>>, %arg2: memref<36x128xbf16, #tpu.memory_space<vmem>>, %arg3: memref<16x128xbf16, #tpu.memory_space<vmem>>, %arg4: memref<16x128xf32, #tpu.memory_space<vmem>>) attributes {dimension_semantics = [#tpu.dimension_semantics<parallel>], iteration_bounds = array<i64: 1>, scalar_prefetch = 0 : i64, scratch_operands = 0 : i64, tpu.core_type = #tpu.core_type<tc>, window_params = [{pipeline_mode = #tpu.pipeline_mode<synchronous>, transform_indices = @transform_0, window_bounds = array<i64: 16, 36>}, {transform_indices = @transform_1, window_bounds = array<i64: 36, 128>}, {transform_indices = @transform_2, window_bounds = array<i64: 16, 128>}, {transform_indices = @transform_3, window_bounds = array<i64: 16, 128>}]} {
    %c0 = arith.constant 0 : index
    %c0_0 = arith.constant 0 : index
    %0 = vector.load %arg1[%c0, %c0_0] : memref<16x36xbf16, #tpu.memory_space<vmem>>, vector<16x36xbf16>
    %c0_1 = arith.constant 0 : index
    %c0_2 = arith.constant 0 : index
    %1 = vector.load %arg2[%c0_1, %c0_2] : memref<36x128xbf16, #tpu.memory_space<vmem>>, vector<36x128xbf16>
    %cst = arith.constant dense<0.000000e+00> : vector<16x128xf32>
    %2 = tpu.matmul %0, %1, %cst {dimension_numbers = #tpu.dot_dimension_numbers<[1], [0], [0], [1], [0, 0, 1, 1], [], []>} : vector<16x36xbf16>, vector<36x128xbf16>, vector<16x128xf32> -> vector<16x128xf32>
    %3 = arith.truncf %2 : vector<16x128xf32> to vector<16x128xbf16>
    %c0_3 = arith.constant 0 : index
    %c0_4 = arith.constant 0 : index
    %4 = vector.load %arg3[%c0_3, %c0_4] : memref<16x128xbf16, #tpu.memory_space<vmem>>, vector<16x128xbf16>
    tpu.vector_store %arg3[%c0_3, %c0_4], %3 {strides = array<i32>} : memref<16x128xbf16, #tpu.memory_space<vmem>>, vector<16x128xbf16>,
    %5 = arith.mulf %2, %2 : vector<16x128xf32>
    %cst_5 = arith.constant dense<0.000000e+00> : vector<16xf32>
    %6 = vector.multi_reduction <add>, %2, %cst_5 [1] : vector<16x128xf32> to vector<16xf32>
    %7 = vector.shape_cast %6 : vector<16xf32> to vector<16x1xf32>
    %cst_6 = arith.constant dense<0.000000e+00> : vector<16xf32>
    %8 = vector.multi_reduction <add>, %5, %cst_6 [1] : vector<16x128xf32> to vector<16xf32>
    %9 = vector.shape_cast %8 : vector<16xf32> to vector<16x1xf32>
    %10 = tpu.iota {dimensions = array<i32: 1>} : vector<16x128xi32>
    %c0_i32 = arith.constant 0 : i32
    %11 = vector.broadcast %c0_i32 : i32 to vector<16x128xi32>
    %12 = arith.cmpi eq, %10, %11 : vector<16x128xi32>
    %c1_i32 = arith.constant 1 : i32
    %13 = vector.broadcast %c1_i32 : i32 to vector<16x128xi32>
    %14 = arith.cmpi eq, %10, %13 : vector<16x128xi32>
    %cst_7 = arith.constant 0.000000e+00 : f32
    %15 = vector.shape_cast %9 : vector<16x1xf32> to vector<16x1xf32>
    %16 = vector.broadcast %15 : vector<16x1xf32> to vector<16x128xf32>
    %17 = vector.broadcast %cst_7 : f32 to vector<16x128xf32>
    %18 = arith.select %14, %16, %17 : vector<16x128xi1>, vector<16x128xf32>
    %19 = vector.shape_cast %7 : vector<16x1xf32> to vector<16x1xf32>
    %20 = vector.broadcast %19 : vector<16x1xf32> to vector<16x128xf32>
    %21 = arith.select %12, %20, %18 : vector<16x128xi1>, vector<16x128xf32>
    %c0_8 = arith.constant 0 : index
    %c0_9 = arith.constant 0 : index
    %22 = vector.load %arg4[%c0_8, %c0_9] : memref<16x128xf32, #tpu.memory_space<vmem>>, vector<16x128xf32>
    tpu.vector_store %arg4[%c0_8, %c0_9], %21 {strides = array<i32>} : memref<16x128xf32, #tpu.memory_space<vmem>>, vector<16x128xf32>,
    return
  }
  func.func @transform_0(%arg0: i32) -> (i32, i32) {
    %c0_i32 = arith.constant 0 : i32
    %c0_i32_0 = arith.constant 0 : i32
    %c0_i32_1 = arith.constant 0 : i32
    return %c0_i32, %c0_i32_0 : i32, i32
  }
  func.func @transform_1(%arg0: i32) -> (i32, i32) {
    %c0_i32 = arith.constant 0 : i32
    %c0_i32_0 = arith.constant 0 : i32
    return %c0_i32, %arg0 : i32, i32
  }
  func.func @transform_2(%arg0: i32) -> (i32, i32) {
    %c0_i32 = arith.constant 0 : i32
    %c0_i32_0 = arith.constant 0 : i32
    return %c0_i32, %arg0 : i32, i32
  }
  func.func @transform_3(%arg0: i32) -> (i32, i32) {
    %c0_i32 = arith.constant 0 : i32
    %c0_i32_0 = arith.constant 0 : i32
    return %c0_i32, %arg0 : i32, i32
  }
}

module attributes {stable_mosaic.version = 11 : i64} {
  func.func @_bn_relu_kernel(%arg0: i32, %arg1: memref<16x1xf32, #tpu.memory_space<vmem>>, %arg2: memref<16x1xf32, #tpu.memory_space<vmem>>, %arg3: memref<16x128xbf16, #tpu.memory_space<vmem>>, %arg4: memref<16x128xbf16, #tpu.memory_space<vmem>>) attributes {dimension_semantics = [#tpu.dimension_semantics<parallel>], iteration_bounds = array<i64: 1>, scalar_prefetch = 0 : i64, scratch_operands = 0 : i64, tpu.core_type = #tpu.core_type<tc>, window_params = [{pipeline_mode = #tpu.pipeline_mode<synchronous>, transform_indices = @transform_0, window_bounds = array<i64: 16, 1>}, {pipeline_mode = #tpu.pipeline_mode<synchronous>, transform_indices = @transform_1, window_bounds = array<i64: 16, 1>}, {transform_indices = @transform_2, window_bounds = array<i64: 16, 128>}, {transform_indices = @transform_3, window_bounds = array<i64: 16, 128>}]} {
    %c0 = arith.constant 0 : index
    %c0_0 = arith.constant 0 : index
    %0 = vector.load %arg3[%c0, %c0_0] : memref<16x128xbf16, #tpu.memory_space<vmem>>, vector<16x128xbf16>
    %1 = arith.extf %0 : vector<16x128xbf16> to vector<16x128xf32>
    %c0_1 = arith.constant 0 : index
    %c0_2 = arith.constant 0 : index
    %2 = vector.load %arg1[%c0_1, %c0_2] : memref<16x1xf32, #tpu.memory_space<vmem>>, vector<16x1xf32>
    %3 = vector.broadcast %2 : vector<16x1xf32> to vector<16x128xf32>
    %4 = arith.mulf %1, %3 : vector<16x128xf32>
    %c0_3 = arith.constant 0 : index
    %c0_4 = arith.constant 0 : index
    %5 = vector.load %arg2[%c0_3, %c0_4] : memref<16x1xf32, #tpu.memory_space<vmem>>, vector<16x1xf32>
    %6 = vector.broadcast %5 : vector<16x1xf32> to vector<16x128xf32>
    %7 = arith.addf %4, %6 : vector<16x128xf32>
    %cst = arith.constant 0.000000e+00 : f32
    %8 = vector.broadcast %cst : f32 to vector<16x128xf32>
    %9 = arith.maximumf %7, %8 : vector<16x128xf32>
    %10 = arith.truncf %9 : vector<16x128xf32> to vector<16x128xbf16>
    %c0_5 = arith.constant 0 : index
    %c0_6 = arith.constant 0 : index
    %11 = vector.load %arg4[%c0_5, %c0_6] : memref<16x128xbf16, #tpu.memory_space<vmem>>, vector<16x128xbf16>
    tpu.vector_store %arg4[%c0_5, %c0_6], %10 {strides = array<i32>} : memref<16x128xbf16, #tpu.memory_space<vmem>>, vector<16x128xbf16>,
    return
  }
  func.func @transform_0(%arg0: i32) -> (i32, i32) {
    %c0_i32 = arith.constant 0 : i32
    %c0_i32_0 = arith.constant 0 : i32
    %c0_i32_1 = arith.constant 0 : i32
    return %c0_i32, %c0_i32_0 : i32, i32
  }
  func.func @transform_1(%arg0: i32) -> (i32, i32) {
    %c0_i32 = arith.constant 0 : i32
    %c0_i32_0 = arith.constant 0 : i32
    %c0_i32_1 = arith.constant 0 : i32
    return %c0_i32, %c0_i32_0 : i32, i32
  }
  func.func @transform_2(%arg0: i32) -> (i32, i32) {
    %c0_i32 = arith.constant 0 : i32
    %c0_i32_0 = arith.constant 0 : i32
    return %c0_i32, %arg0 : i32, i32
  }
  func.func @transform_3(%arg0: i32) -> (i32, i32) {
    %c0_i32 = arith.constant 0 : i32
    %c0_i32_0 = arith.constant 0 : i32
    return %c0_i32, %arg0 : i32, i32
  }
}

module attributes {stable_mosaic.version = 11 : i64} {
  func.func @_conv_stats_kernel(%arg0: i32, %arg1: memref<32x144xbf16, #tpu.memory_space<vmem>>, %arg2: memref<144x32xbf16, #tpu.memory_space<vmem>>, %arg3: memref<32x32xbf16, #tpu.memory_space<vmem>>, %arg4: memref<32x128xf32, #tpu.memory_space<vmem>>) attributes {dimension_semantics = [#tpu.dimension_semantics<parallel>], iteration_bounds = array<i64: 1>, scalar_prefetch = 0 : i64, scratch_operands = 0 : i64, tpu.core_type = #tpu.core_type<tc>, window_params = [{pipeline_mode = #tpu.pipeline_mode<synchronous>, transform_indices = @transform_0, window_bounds = array<i64: 32, 144>}, {transform_indices = @transform_1, window_bounds = array<i64: 144, 32>}, {transform_indices = @transform_2, window_bounds = array<i64: 32, 32>}, {transform_indices = @transform_3, window_bounds = array<i64: 32, 128>}]} {
    %c0 = arith.constant 0 : index
    %c0_0 = arith.constant 0 : index
    %0 = vector.load %arg1[%c0, %c0_0] : memref<32x144xbf16, #tpu.memory_space<vmem>>, vector<32x144xbf16>
    %c0_1 = arith.constant 0 : index
    %c0_2 = arith.constant 0 : index
    %1 = vector.load %arg2[%c0_1, %c0_2] : memref<144x32xbf16, #tpu.memory_space<vmem>>, vector<144x32xbf16>
    %cst = arith.constant dense<0.000000e+00> : vector<32x32xf32>
    %2 = tpu.matmul %0, %1, %cst {dimension_numbers = #tpu.dot_dimension_numbers<[1], [0], [0], [1], [0, 0, 1, 1], [], []>} : vector<32x144xbf16>, vector<144x32xbf16>, vector<32x32xf32> -> vector<32x32xf32>
    %3 = arith.truncf %2 : vector<32x32xf32> to vector<32x32xbf16>
    %c0_3 = arith.constant 0 : index
    %c0_4 = arith.constant 0 : index
    %4 = vector.load %arg3[%c0_3, %c0_4] : memref<32x32xbf16, #tpu.memory_space<vmem>>, vector<32x32xbf16>
    tpu.vector_store %arg3[%c0_3, %c0_4], %3 {strides = array<i32>} : memref<32x32xbf16, #tpu.memory_space<vmem>>, vector<32x32xbf16>,
    %5 = arith.mulf %2, %2 : vector<32x32xf32>
    %cst_5 = arith.constant dense<0.000000e+00> : vector<32xf32>
    %6 = vector.multi_reduction <add>, %2, %cst_5 [1] : vector<32x32xf32> to vector<32xf32>
    %7 = vector.shape_cast %6 : vector<32xf32> to vector<32x1xf32>
    %cst_6 = arith.constant dense<0.000000e+00> : vector<32xf32>
    %8 = vector.multi_reduction <add>, %5, %cst_6 [1] : vector<32x32xf32> to vector<32xf32>
    %9 = vector.shape_cast %8 : vector<32xf32> to vector<32x1xf32>
    %10 = tpu.iota {dimensions = array<i32: 1>} : vector<32x128xi32>
    %c0_i32 = arith.constant 0 : i32
    %11 = vector.broadcast %c0_i32 : i32 to vector<32x128xi32>
    %12 = arith.cmpi eq, %10, %11 : vector<32x128xi32>
    %c1_i32 = arith.constant 1 : i32
    %13 = vector.broadcast %c1_i32 : i32 to vector<32x128xi32>
    %14 = arith.cmpi eq, %10, %13 : vector<32x128xi32>
    %cst_7 = arith.constant 0.000000e+00 : f32
    %15 = vector.shape_cast %9 : vector<32x1xf32> to vector<32x1xf32>
    %16 = vector.broadcast %15 : vector<32x1xf32> to vector<32x128xf32>
    %17 = vector.broadcast %cst_7 : f32 to vector<32x128xf32>
    %18 = arith.select %14, %16, %17 : vector<32x128xi1>, vector<32x128xf32>
    %19 = vector.shape_cast %7 : vector<32x1xf32> to vector<32x1xf32>
    %20 = vector.broadcast %19 : vector<32x1xf32> to vector<32x128xf32>
    %21 = arith.select %12, %20, %18 : vector<32x128xi1>, vector<32x128xf32>
    %c0_8 = arith.constant 0 : index
    %c0_9 = arith.constant 0 : index
    %22 = vector.load %arg4[%c0_8, %c0_9] : memref<32x128xf32, #tpu.memory_space<vmem>>, vector<32x128xf32>
    tpu.vector_store %arg4[%c0_8, %c0_9], %21 {strides = array<i32>} : memref<32x128xf32, #tpu.memory_space<vmem>>, vector<32x128xf32>,
    return
  }
  func.func @transform_0(%arg0: i32) -> (i32, i32) {
    %c0_i32 = arith.constant 0 : i32
    %c0_i32_0 = arith.constant 0 : i32
    %c0_i32_1 = arith.constant 0 : i32
    return %c0_i32, %c0_i32_0 : i32, i32
  }
  func.func @transform_1(%arg0: i32) -> (i32, i32) {
    %c0_i32 = arith.constant 0 : i32
    %c0_i32_0 = arith.constant 0 : i32
    return %c0_i32, %arg0 : i32, i32
  }
  func.func @transform_2(%arg0: i32) -> (i32, i32) {
    %c0_i32 = arith.constant 0 : i32
    %c0_i32_0 = arith.constant 0 : i32
    return %c0_i32, %arg0 : i32, i32
  }
  func.func @transform_3(%arg0: i32) -> (i32, i32) {
    %c0_i32 = arith.constant 0 : i32
    %c0_i32_0 = arith.constant 0 : i32
    return %c0_i32, %arg0 : i32, i32
  }
}

module attributes {stable_mosaic.version = 11 : i64} {
  func.func @_bn_relu_kernel(%arg0: i32, %arg1: memref<32x1xf32, #tpu.memory_space<vmem>>, %arg2: memref<32x1xf32, #tpu.memory_space<vmem>>, %arg3: memref<32x32xbf16, #tpu.memory_space<vmem>>, %arg4: memref<32x32xbf16, #tpu.memory_space<vmem>>) attributes {dimension_semantics = [#tpu.dimension_semantics<parallel>], iteration_bounds = array<i64: 1>, scalar_prefetch = 0 : i64, scratch_operands = 0 : i64, tpu.core_type = #tpu.core_type<tc>, window_params = [{pipeline_mode = #tpu.pipeline_mode<synchronous>, transform_indices = @transform_0, window_bounds = array<i64: 32, 1>}, {pipeline_mode = #tpu.pipeline_mode<synchronous>, transform_indices = @transform_1, window_bounds = array<i64: 32, 1>}, {transform_indices = @transform_2, window_bounds = array<i64: 32, 32>}, {transform_indices = @transform_3, window_bounds = array<i64: 32, 32>}]} {
    %c0 = arith.constant 0 : index
    %c0_0 = arith.constant 0 : index
    %0 = vector.load %arg3[%c0, %c0_0] : memref<32x32xbf16, #tpu.memory_space<vmem>>, vector<32x32xbf16>
    %1 = arith.extf %0 : vector<32x32xbf16> to vector<32x32xf32>
    %c0_1 = arith.constant 0 : index
    %c0_2 = arith.constant 0 : index
    %2 = vector.load %arg1[%c0_1, %c0_2] : memref<32x1xf32, #tpu.memory_space<vmem>>, vector<32x1xf32>
    %3 = vector.broadcast %2 : vector<32x1xf32> to vector<32x32xf32>
    %4 = arith.mulf %1, %3 : vector<32x32xf32>
    %c0_3 = arith.constant 0 : index
    %c0_4 = arith.constant 0 : index
    %5 = vector.load %arg2[%c0_3, %c0_4] : memref<32x1xf32, #tpu.memory_space<vmem>>, vector<32x1xf32>
    %6 = vector.broadcast %5 : vector<32x1xf32> to vector<32x32xf32>
    %7 = arith.addf %4, %6 : vector<32x32xf32>
    %cst = arith.constant 0.000000e+00 : f32
    %8 = vector.broadcast %cst : f32 to vector<32x32xf32>
    %9 = arith.maximumf %7, %8 : vector<32x32xf32>
    %10 = arith.truncf %9 : vector<32x32xf32> to vector<32x32xbf16>
    %c0_5 = arith.constant 0 : index
    %c0_6 = arith.constant 0 : index
    %11 = vector.load %arg4[%c0_5, %c0_6] : memref<32x32xbf16, #tpu.memory_space<vmem>>, vector<32x32xbf16>
    tpu.vector_store %arg4[%c0_5, %c0_6], %10 {strides = array<i32>} : memref<32x32xbf16, #tpu.memory_space<vmem>>, vector<32x32xbf16>,
    return
  }
  func.func @transform_0(%arg0: i32) -> (i32, i32) {
    %c0_i32 = arith.constant 0 : i32
    %c0_i32_0 = arith.constant 0 : i32
    %c0_i32_1 = arith.constant 0 : i32
    return %c0_i32, %c0_i32_0 : i32, i32
  }
  func.func @transform_1(%arg0: i32) -> (i32, i32) {
    %c0_i32 = arith.constant 0 : i32
    %c0_i32_0 = arith.constant 0 : i32
    %c0_i32_1 = arith.constant 0 : i32
    return %c0_i32, %c0_i32_0 : i32, i32
  }
  func.func @transform_2(%arg0: i32) -> (i32, i32) {
    %c0_i32 = arith.constant 0 : i32
    %c0_i32_0 = arith.constant 0 : i32
    return %c0_i32, %arg0 : i32, i32
  }
  func.func @transform_3(%arg0: i32) -> (i32, i32) {
    %c0_i32 = arith.constant 0 : i32
    %c0_i32_0 = arith.constant 0 : i32
    return %c0_i32, %arg0 : i32, i32
  }
}

</mosaic_0001>

<llo_original>
// kernel: conv_stem_forward.4
$region0: #{conv_stem_forward.4}
  #allocation0 [shape = 'u32[]', space=smem, size = 0x4, offset = 0x4, fixed_abs, tag = 'smem constant byte address 0x4 - core index']
  #allocation1 [shape = 'u32[144,128]{1,0:T(1,128)}', space=vmem, size = 0x12000, scoped, tag = 'internal scratch']
  %s0 = inlined_call_operand.vmem [shape: bf16[16,36], index: 0, kind: input, shape index: {}]
  %s1 = inlined_call_operand.vmem [shape: bf16[36,128], index: 1, kind: input, shape index: {}]
  %s2 = inlined_call_operand.vmem [shape: bf16[16,128], index: 2, kind: output, shape index: {0}]
  %s3 = inlined_call_operand.vmem [shape: f32[16,128], index: 3, kind: output, shape index: {1}]
  %4 = xla_tuple %s2, %s3
  %s5 = sld [smem:[#allocation0]]
  $region26: #{conv_stem_forward.4} parent=0
    _
  %s7 = ssub.s32 1, %s5
  %s8 = scalar_select 0, %s7, %s5
  // Predicated region
  $region2: #{conv_stem_forward.4} parent=0 // pred_check
    _
  $region3: #{conv_stem_forward.4} parent=0 // pred_check_branch
    %10 = sbr.rel (0) target = $region5
  $region4: #{conv_stem_forward.4} parent=0 // pred_region
    _
  $region5: #{conv_stem_forward.4} parent=0 // pred_fallthru
    _
  // Predicated region
  $region6: #{conv_stem_forward.4} parent=0 // pred_check
    _
  $region7: #{conv_stem_forward.4} parent=0 // pred_check_branch
    %12 = sbr.rel (0) target = $region9
  $region8: #{conv_stem_forward.4} parent=0 // pred_region
    _
  $region9: #{conv_stem_forward.4} parent=0 // pred_fallthru
    _
  %v14 = vld [vmem:[%s0] sm:$0xf]
  %v15 = vld [vmem:[%s0 + $0x4] sm:$0xf]
  %v16 = vld [vmem:[%s1] sm:$0xf]
  %v17 = vld [vmem:[%s1 + $0x4] sm:$0xf]
  %v18 = vld [vmem:[%s1 + $0x8] sm:$0xf]
  %v19 = vld [vmem:[%s1 + $0xc] sm:$0xf]
  %v20 = vld [vmem:[%s1 + $0x10] sm:$0x3]
  %v23 = vunpack.c.l.b16 %v14
  %v24 = vunpack.c.l.b16 %v15
  %v25 = vpack.c.b16 %v24, %v23
  %v31 = vunpack.c.l.b16 %v16
  %v32 = vunpack.c.l.b16 %v17
  %v33 = vunpack.c.l.b16 %v18
  %v34 = vunpack.c.l.b16 %v19
  %v35 = vunpack.c.l.b16 %v20
  %v36 = vpack.c.b16 %v32, %v31
  %v37 = vpack.c.b16 %v34, %v33
  %v38 = vpack.c.b16 %v35, %v35
  %vm41 = vcmask 293888
  %v43 = vsel %vm41, %v25, 0
  %vm45 = vcmask 1041408
  %v47 = vsel %vm45, %v38, 0
  %49 = vmatprep.subr.bf16.mxu0 0
  %50 = vmatpush1.bf16.msra.mxu0 %v36
  %51 = vmatprep.subr.bf16.mxu0 0
  %52 = vmatpush1.bf16.msra.mxu0 %v37
  %53 = vmatprep.subr.bf16.mxu0 0
  %54 = vmatpush1.bf16.msra.mxu0 %v47
  %55 = vmatprep.subr.bf16.mxu0 0
  %56 = vmatpush1.bf16.msra.mxu0 0
  %57 = vmatprep.subr.bf16.mxu0 0
  %58 = vmatpush1.bf16.msra.mxu0 0
  %59 = vmatprep.subr.bf16.mxu0 0
  %60 = vmatpush1.bf16.msra.mxu0 0
  %61 = vmatprep.subr.bf16.mxu0 0
  %62 = vmatpush1.bf16.msra.mxu0 0
  %63 = vmatprep.subr.bf16.mxu0 0
  %64 = vmatpush1.bf16.msra.mxu0 0
  %65 = vmatprep.subr.bf16.mxu0 0
  %66 = vmatpush1.bf16.msra.mxu0 0
  %67 = vmatprep.subr.bf16.mxu0 0
  %68 = vmatpush1.bf16.msra.mxu0 0
  %69 = vmatprep.subr.bf16.mxu0 0
  %70 = vmatpush1.bf16.msra.mxu0 0
  %71 = vmatprep.subr.bf16.mxu0 0
  %72 = vmatpush1.bf16.msra.mxu0 0
  %73 = vmatprep.subr.bf16.mxu0 0
  %74 = vmatpush1.bf16.msra.mxu0 0
  %75 = vmatprep.subr.bf16.mxu0 0
  %76 = vmatpush1.bf16.msra.mxu0 0
  %77 = vmatprep.subr.bf16.mxu0 0
  %78 = vmatpush1.bf16.msra.mxu0 0
  %79 = vmatprep.subr.bf16.mxu0 0
  %80 = vmatpush1.bf16.msra.mxu0 0
  %81 = vmatprep.mubr.bf16.mxu0 0
  %82 = vmatmul.mubr.bf16.gmra.mrb[0].mxu0 %v43
  %v83 = vpop.f32.mrb[0].mxu0
  %v84 = vadd.f32 0.0, %v83
  %v85 = vpop.f32.mrb[0].mxu0
  %v86 = vpop.f32.mrb[0].mxu0
  %v87 = vadd.f32 0.0, %v86
  %v88 = vpop.f32.mrb[0].mxu0
  %89 = vdwg.mxu0
  %v90 = vpack.c.bf16 %v87, %v84
  %v92 = vunpack.c.l.b16 %v90
  %v93 = vunpack.c.h.b16 %v90
  %v94 = vpack.c.b16 %v92, %v92
  %v95 = vpack.c.b16 %v93, %v93
  %98 = vst [vmem:[%s2] sm:$0xf] %v94
  %99 = vst [vmem:[%s2 + $0x4] sm:$0xf] %v95
  %v100 = vmul.f32 %v84, %v84
  %v101 = vmul.f32 %v87, %v87
  %102 = vadd.xlane.f32.xlu0 %v84
  %v103 = vpop.xlane.xlu0 %102
  %104 = vadd.xlane.f32.xlu0 %v87
  %v105 = vpop.xlane.xlu0 %104
  %106 = vadd.xlane.f32.xlu0 %v100
  %v107 = vpop.xlane.xlu0 %106
  %108 = vadd.xlane.f32.xlu0 %v101
  %v109 = vpop.xlane.xlu0 %108
  %v110 = vlaneseq
  %v111 = vand.u32 %v110, 127
  %vm112 = vcmp.eq.s32.totalorder %v111, 0
  %vm113 = vcmp.eq.s32.totalorder %v111, 1
  %v114 = vsel %vm113, %v107, 0.0
  %v115 = vsel %vm113, %v109, 0.0
  %v116 = vsel %vm112, %v103, %v114
  %v117 = vsel %vm112, %v105, %v115
  %118 = vst [vmem:[%s3] sm:$0xff] %v116
  %119 = vst [vmem:[%s3 + $0x8] sm:$0xff] %v117
  // Predicated region
  $region10: #{conv_stem_forward.4} parent=0 // pred_check
    _
  $region11: #{conv_stem_forward.4} parent=0 // pred_check_branch
    %121 = sbr.rel (0) target = $region13
  $region12: #{conv_stem_forward.4} parent=0 // pred_region
    _
  $region13: #{conv_stem_forward.4} parent=0 // pred_fallthru
    _
  // Predicated region
  $region14: #{conv_stem_forward.4} parent=0 // pred_check
    _
  $region15: #{conv_stem_forward.4} parent=0 // pred_check_branch
    %123 = sbr.rel (0) target = $region17
  $region16: #{conv_stem_forward.4} parent=0 // pred_region
    _
  $region17: #{conv_stem_forward.4} parent=0 // pred_fallthru
    _
  // Predicated region
  $region18: #{conv_stem_forward.4} parent=0 // pred_check
    _
  $region19: #{conv_stem_forward.4} parent=0 // pred_check_branch
    %125 = sbr.rel (0) target = $region21
  $region20: #{conv_stem_forward.4} parent=0 // pred_region
    _
  $region21: #{conv_stem_forward.4} parent=0 // pred_fallthru
    _
  // Predicated region
  $region22: #{conv_stem_forward.4} parent=0 // pred_check
    _
  $region23: #{conv_stem_forward.4} parent=0 // pred_check_branch
    %127 = sbr.rel (0) target = $region25
  $region24: #{conv_stem_forward.4} parent=0 // pred_region
    _
  $region25: #{conv_stem_forward.4} parent=0 // pred_fallthru
    _

// kernel: conv_stem_forward.5
$region0: #{conv_stem_forward.5}
  #allocation0 [shape = 'u32[]', space=smem, size = 0x4, offset = 0x4, fixed_abs, tag = 'smem constant byte address 0x4 - core index']
  #allocation1 [shape = 'u32[144,128]{1,0:T(1,128)}', space=vmem, size = 0x12000, scoped, tag = 'internal scratch']
  %s0 = inlined_call_operand.vmem [shape: f32[16,1], index: 0, kind: input, shape index: {}]
  %s1 = inlined_call_operand.vmem [shape: f32[16,1], index: 1, kind: input, shape index: {}]
  %s2 = inlined_call_operand.vmem [shape: bf16[16,128], index: 2, kind: input, shape index: {}]
  %s3 = inlined_call_operand.vmem [shape: bf16[16,128], index: 3, kind: output, shape index: {}]
  %s4 = sld [smem:[#allocation0]]
  $region22: #{conv_stem_forward.5} parent=0
    _
  %s6 = ssub.s32 1, %s4
  %s7 = scalar_select 0, %s6, %s4
  // Predicated region
  $region2: #{conv_stem_forward.5} parent=0 // pred_check
    _
  $region3: #{conv_stem_forward.5} parent=0 // pred_check_branch
    %9 = sbr.rel (0) target = $region5
  $region4: #{conv_stem_forward.5} parent=0 // pred_region
    _
  $region5: #{conv_stem_forward.5} parent=0 // pred_fallthru
    _
  // Predicated region
  $region6: #{conv_stem_forward.5} parent=0 // pred_check
    _
  $region7: #{conv_stem_forward.5} parent=0 // pred_check_branch
    %11 = sbr.rel (0) target = $region9
  $region8: #{conv_stem_forward.5} parent=0 // pred_region
    _
  $region9: #{conv_stem_forward.5} parent=0 // pred_fallthru
    _
  // Predicated region
  $region10: #{conv_stem_forward.5} parent=0 // pred_check
    _
  $region11: #{conv_stem_forward.5} parent=0 // pred_check_branch
    %13 = sbr.rel (0) target = $region13
  $region12: #{conv_stem_forward.5} parent=0 // pred_region
    _
  $region13: #{conv_stem_forward.5} parent=0 // pred_fallthru
    _
  %v14 = vld [vmem:[%s2] sm:$0xf]
  %v15 = vld [vmem:[%s2 + $0x4] sm:$0xf]
  %v16 = vunpack.c.l.bf16 %v14
  %v17 = vunpack.c.l.bf16 %v15
  %v18 = vld [vmem:[%s0] sm:$0xff]
  %v19 = vld [vmem:[%s0 + $0x8] sm:$0xff]
  %21 = vset.pattern.permute.xlu0 0
  %22 = vperm.xlu0 %21, %v18
  %v23 = vpop.permute.xlu0 %22
  %26 = vset.pattern.permute.xlu0 0
  %27 = vperm.xlu0 %26, %v19
  %v28 = vpop.permute.xlu0 %27
  %v30 = vmul.f32 %v16, %v23
  %v31 = vmul.f32 %v17, %v28
  %v32 = vld [vmem:[%s1] sm:$0xff]
  %v33 = vld [vmem:[%s1 + $0x8] sm:$0xff]
  %35 = vset.pattern.permute.xlu0 0
  %36 = vperm.xlu0 %35, %v32
  %v37 = vpop.permute.xlu0 %36
  %40 = vset.pattern.permute.xlu0 0
  %41 = vperm.xlu0 %40, %v33
  %v42 = vpop.permute.xlu0 %41
  %v44 = vadd.f32 %v30, %v37
  %v45 = vadd.f32 %v31, %v42
  %v46 = vmax.f32 %v44, 0.0
  %v47 = vmax.f32 %v45, 0.0
  %v48 = vpack.c.bf16 %v47, %v46
  %v50 = vunpack.c.l.b16 %v48
  %v51 = vunpack.c.h.b16 %v48
  %v52 = vpack.c.b16 %v50, %v50
  %v53 = vpack.c.b16 %v51, %v51
  %56 = vst [vmem:[%s3] sm:$0xf] %v52
  %57 = vst [vmem:[%s3 + $0x4] sm:$0xf] %v53
  // Predicated region
  $region14: #{conv_stem_forward.5} parent=0 // pred_check
    _
  $region15: #{conv_stem_forward.5} parent=0 // pred_check_branch
    %59 = sbr.rel (0) target = $region17
  $region16: #{conv_stem_forward.5} parent=0 // pred_region
    _
  $region17: #{conv_stem_forward.5} parent=0 // pred_fallthru
    _
  // Predicated region
  $region18: #{conv_stem_forward.5} parent=0 // pred_check
    _
  $region19: #{conv_stem_forward.5} parent=0 // pred_check_branch
    %61 = sbr.rel (0) target = $region21
  $region20: #{conv_stem_forward.5} parent=0 // pred_region
    _
  $region21: #{conv_stem_forward.5} parent=0 // pred_fallthru
    _

// kernel: conv_stem_forward.6
$region0: #{conv_stem_forward.6}
  #allocation0 [shape = 'u32[]', space=smem, size = 0x4, offset = 0x4, fixed_abs, tag = 'smem constant byte address 0x4 - core index']
  #allocation1 [shape = 'u32[144,128]{1,0:T(1,128)}', space=vmem, size = 0x12000, scoped, tag = 'internal scratch']
  %s0 = inlined_call_operand.vmem [shape: bf16[32,144], index: 0, kind: input, shape index: {}]
  %s1 = inlined_call_operand.vmem [shape: bf16[144,32], index: 1, kind: input, shape index: {}]
  %s2 = inlined_call_operand.vmem [shape: bf16[32,32], index: 2, kind: output, shape index: {0}]
  %s3 = inlined_call_operand.vmem [shape: f32[32,128], index: 3, kind: output, shape index: {1}]
  %4 = xla_tuple %s2, %s3
  %s5 = sld [smem:[#allocation0]]
  $region26: #{conv_stem_forward.6} parent=0
    _
  %s7 = ssub.s32 1, %s5
  %s8 = scalar_select 0, %s7, %s5
  // Predicated region
  $region2: #{conv_stem_forward.6} parent=0 // pred_check
    _
  $region3: #{conv_stem_forward.6} parent=0 // pred_check_branch
    %10 = sbr.rel (0) target = $region5
  $region4: #{conv_stem_forward.6} parent=0 // pred_region
    _
  $region5: #{conv_stem_forward.6} parent=0 // pred_fallthru
    _
  // Predicated region
  $region6: #{conv_stem_forward.6} parent=0 // pred_check
    _
  $region7: #{conv_stem_forward.6} parent=0 // pred_check_branch
    %12 = sbr.rel (0) target = $region9
  $region8: #{conv_stem_forward.6} parent=0 // pred_region
    _
  $region9: #{conv_stem_forward.6} parent=0 // pred_fallthru
    _
  %v14 = vld [vmem:[%s0] sm:$0xff]
  %v15 = vld [vmem:[%s0 + $0x8] sm:$0xff]
  %v16 = vld [vmem:[%s0 + $0x10] sm:$0xff]
  %v17 = vld [vmem:[%s0 + $0x18] sm:$0xff]
  %v18 = vld [vmem:[%s1] sm:$0xf]
  %v19 = vld [vmem:[%s1 + $0x4] sm:$0xf]
  %v20 = vld [vmem:[%s1 + $0x8] sm:$0xf]
  %v21 = vld [vmem:[%s1 + $0xc] sm:$0xf]
  %v22 = vld [vmem:[%s1 + $0x10] sm:$0xf]
  %v23 = vld [vmem:[%s1 + $0x14] sm:$0xf]
  %v24 = vld [vmem:[%s1 + $0x18] sm:$0xf]
  %v25 = vld [vmem:[%s1 + $0x1c] sm:$0xf]
  %v26 = vld [vmem:[%s1 + $0x20] sm:$0xf]
  %v27 = vld [vmem:[%s1 + $0x24] sm:$0xf]
  %v28 = vld [vmem:[%s1 + $0x28] sm:$0xf]
  %v29 = vld [vmem:[%s1 + $0x2c] sm:$0xf]
  %v30 = vld [vmem:[%s1 + $0x30] sm:$0xf]
  %v31 = vld [vmem:[%s1 + $0x34] sm:$0xf]
  %v32 = vld [vmem:[%s1 + $0x38] sm:$0xf]
  %v33 = vld [vmem:[%s1 + $0x3c] sm:$0xf]
  %v34 = vld [vmem:[%s1 + $0x40] sm:$0xf]
  %v35 = vld [vmem:[%s1 + $0x44] sm:$0xf]
  %v40 = vunpack.c.l.b16 %v14
  %v41 = vunpack.c.h.b16 %v14
  %v42 = vunpack.c.l.b16 %v15
  %v43 = vunpack.c.h.b16 %v15
  %v44 = vunpack.c.l.b16 %v16
  %v45 = vunpack.c.h.b16 %v16
  %v46 = vunpack.c.l.b16 %v17
  %v47 = vunpack.c.h.b16 %v17
  %v48 = vpack.c.b16 %v42, %v40
  %v49 = vpack.c.b16 %v43, %v41
  %v50 = vpack.c.b16 %v46, %v44
  %v51 = vpack.c.b16 %v47, %v45
  %v72 = vunpack.c.l.b16 %v18
  %v73 = vunpack.c.l.b16 %v19
  %v74 = vunpack.c.l.b16 %v20
  %v75 = vunpack.c.l.b16 %v21
  %v76 = vunpack.c.l.b16 %v22
  %v77 = vunpack.c.l.b16 %v23
  %v78 = vunpack.c.l.b16 %v24
  %v79 = vunpack.c.l.b16 %v25
  %v80 = vunpack.c.l.b16 %v26
  %v81 = vunpack.c.l.b16 %v27
  %v82 = vunpack.c.l.b16 %v28
  %v83 = vunpack.c.l.b16 %v29
  %v84 = vunpack.c.l.b16 %v30
  %v85 = vunpack.c.l.b16 %v31
  %v86 = vunpack.c.l.b16 %v32
  %v87 = vunpack.c.l.b16 %v33
  %v88 = vunpack.c.l.b16 %v34
  %v89 = vunpack.c.l.b16 %v35
  %v90 = vpack.c.b16 %v73, %v72
  %v91 = vpack.c.b16 %v75, %v74
  %v92 = vpack.c.b16 %v77, %v76
  %v93 = vpack.c.b16 %v79, %v78
  %v94 = vpack.c.b16 %v81, %v80
  %v95 = vpack.c.b16 %v83, %v82
  %v96 = vpack.c.b16 %v85, %v84
  %v97 = vpack.c.b16 %v87, %v86
  %v98 = vpack.c.b16 %v89, %v88
  %vm108 = vcmask 130048
  %v110 = vsel %vm108, %v49, 0
  %v113 = vsel %vm108, %v51, 0
  %115 = vmatprep.subr.bf16.mxu0 0
  %116 = vmatpush1.bf16.msra.mxu0 %v90
  %117 = vmatprep.subr.bf16.mxu0 0
  %118 = vmatpush1.bf16.msra.mxu0 %v91
  %119 = vmatprep.subr.bf16.mxu0 0
  %120 = vmatpush1.bf16.msra.mxu0 %v92
  %121 = vmatprep.subr.bf16.mxu0 0
  %122 = vmatpush1.bf16.msra.mxu0 %v93
  %123 = vmatprep.subr.bf16.mxu0 0
  %124 = vmatpush1.bf16.msra.mxu0 %v94
  %125 = vmatprep.subr.bf16.mxu0 0
  %126 = vmatpush1.bf16.msra.mxu0 %v95
  %127 = vmatprep.subr.bf16.mxu0 0
  %128 = vmatpush1.bf16.msra.mxu0 %v96
  %129 = vmatprep.subr.bf16.mxu0 0
  %130 = vmatpush1.bf16.msra.mxu0 %v97
  %131 = vmatprep.subr.bf16.mxu0 0
  %132 = vmatpush1.bf16.msra.mxu0 %v98
  %133 = vmatprep.subr.bf16.mxu0 0
  %134 = vmatpush1.bf16.msra.mxu0 0
  %135 = vmatprep.subr.bf16.mxu0 0
  %136 = vmatpush1.bf16.msra.mxu0 0
  %137 = vmatprep.subr.bf16.mxu0 0
  %138 = vmatpush1.bf16.msra.mxu0 0
  %139 = vmatprep.subr.bf16.mxu0 0
  %140 = vmatpush1.bf16.msra.mxu0 0
  %141 = vmatprep.subr.bf16.mxu0 0
  %142 = vmatpush1.bf16.msra.mxu0 0
  %143 = vmatprep.subr.bf16.mxu0 0
  %144 = vmatpush1.bf16.msra.mxu0 0
  %145 = vmatprep.subr.bf16.mxu0 0
  %146 = vmatpush1.bf16.msra.mxu0 0
  %147 = vmatprep.mubr.bf16.mxu0 %v110
  %148 = vmatmul.mubr.bf16.gmra.mrb[0].mxu0 %v48
  %v149 = vpop.f32.mrb[0].mxu0
  %v150 = vadd.f32 0.0, %v149
  %v151 = vpop.f32.mrb[0].mxu0
  %v152 = vpop.f32.mrb[0].mxu0
  %v153 = vadd.f32 0.0, %v152
  %v154 = vpop.f32.mrb[0].mxu0
  %155 = vmatprep.mubr.bf16.mxu0 %v113
  %156 = vmatmul.mubr.bf16.gmra.mrb[0].mxu0 %v50
  %v157 = vpop.f32.mrb[0].mxu0
  %v158 = vadd.f32 0.0, %v157
  %v159 = vpop.f32.mrb[0].mxu0
  %v160 = vpop.f32.mrb[0].mxu0
  %v161 = vadd.f32 0.0, %v160
  %v162 = vpop.f32.mrb[0].mxu0
  %163 = vdwg.mxu0
  %v164 = vpack.c.bf16 %v153, %v150
  %v165 = vpack.c.bf16 %v161, %v158
  %v168 = vunpack.c.l.b16 %v164
  %v169 = vunpack.c.h.b16 %v164
  %v170 = vunpack.c.l.b16 %v165
  %v171 = vunpack.c.h.b16 %v165
  %v172 = vpack.c.b16 %v168, %v168
  %v173 = vpack.c.b16 %v169, %v169
  %v174 = vpack.c.b16 %v170, %v170
  %v175 = vpack.c.b16 %v171, %v171
  %vm180 = vcmask 257024
  %181 = vst.msk [vmem:[%s2] sm:$0xf] %vm180, %v172
  %182 = vst.msk [vmem:[%s2 + $0x4] sm:$0xf] %vm180, %v173
  %183 = vst.msk [vmem:[%s2 + $0x8] sm:$0xf] %vm180, %v174
  %184 = vst.msk [vmem:[%s2 + $0xc] sm:$0xf] %vm180, %v175
  %v185 = vmul.f32 %v150, %v150
  %v186 = vmul.f32 %v153, %v153
  %v187 = vmul.f32 %v158, %v158
  %v188 = vmul.f32 %v161, %v161
  %vm189 = vcmask 261120
  %v190 = vsel %vm189, %v150, 0.0
  %191 = vadd.xlane.f32.xlu0 %v190
  %v192 = vpop.xlane.xlu0 %191
  %v193 = vsel %vm189, %v153, 0.0
  %194 = vadd.xlane.f32.xlu0 %v193
  %v195 = vpop.xlane.xlu0 %194
  %v196 = vsel %vm189, %v158, 0.0
  %197 = vadd.xlane.f32.xlu0 %v196
  %v198 = vpop.xlane.xlu0 %197
  %v199 = vsel %vm189, %v161, 0.0
  %200 = vadd.xlane.f32.xlu0 %v199
  %v201 = vpop.xlane.xlu0 %200
  %v202 = vsel %vm189, %v185, 0.0
  %203 = vadd.xlane.f32.xlu0 %v202
  %v204 = vpop.xlane.xlu0 %203
  %v205 = vsel %vm189, %v186, 0.0
  %206 = vadd.xlane.f32.xlu0 %v205
  %v207 = vpop.xlane.xlu0 %206
  %v208 = vsel %vm189, %v187, 0.0
  %209 = vadd.xlane.f32.xlu0 %v208
  %v210 = vpop.xlane.xlu0 %209
  %v211 = vsel %vm189, %v188, 0.0
  %212 = vadd.xlane.f32.xlu0 %v211
  %v213 = vpop.xlane.xlu0 %212
  %v214 = vlaneseq
  %v215 = vand.u32 %v214, 127
  %vm216 = vcmp.eq.s32.totalorder %v215, 0
  %vm217 = vcmp.eq.s32.totalorder %v215, 1
  %v218 = vsel %vm217, %v204, 0.0
  %v219 = vsel %vm217, %v207, 0.0
  %v220 = vsel %vm217, %v210, 0.0
  %v221 = vsel %vm217, %v213, 0.0
  %v222 = vsel %vm216, %v192, %v218
  %v223 = vsel %vm216, %v195, %v219
  %v224 = vsel %vm216, %v198, %v220
  %v225 = vsel %vm216, %v201, %v221
  %226 = vst [vmem:[%s3] sm:$0xff] %v222
  %227 = vst [vmem:[%s3 + $0x8] sm:$0xff] %v223
  %228 = vst [vmem:[%s3 + $0x10] sm:$0xff] %v224
  %229 = vst [vmem:[%s3 + $0x18] sm:$0xff] %v225
  // Predicated region
  $region10: #{conv_stem_forward.6} parent=0 // pred_check
    _
  $region11: #{conv_stem_forward.6} parent=0 // pred_check_branch
    %231 = sbr.rel (0) target = $region13
  $region12: #{conv_stem_forward.6} parent=0 // pred_region
    _
  $region13: #{conv_stem_forward.6} parent=0 // pred_fallthru
    _
  // Predicated region
  $region14: #{conv_stem_forward.6} parent=0 // pred_check
    _
  $region15: #{conv_stem_forward.6} parent=0 // pred_check_branch
    %233 = sbr.rel (0) target = $region17
  $region16: #{conv_stem_forward.6} parent=0 // pred_region
    _
  $region17: #{conv_stem_forward.6} parent=0 // pred_fallthru
    _
  // Predicated region
  $region18: #{conv_stem_forward.6} parent=0 // pred_check
    _
  $region19: #{conv_stem_forward.6} parent=0 // pred_check_branch
    %235 = sbr.rel (0) target = $region21
  $region20: #{conv_stem_forward.6} parent=0 // pred_region
    _
  $region21: #{conv_stem_forward.6} parent=0 // pred_fallthru
    _
  // Predicated region
  $region22: #{conv_stem_forward.6} parent=0 // pred_check
    _
  $region23: #{conv_stem_forward.6} parent=0 // pred_check_branch
    %237 = sbr.rel (0) target = $region25
  $region24: #{conv_stem_forward.6} parent=0 // pred_region
    _
  $region25: #{conv_stem_forward.6} parent=0 // pred_fallthru
    _

// kernel: conv_stem_forward.7
$region0: #{conv_stem_forward.7}
  #allocation0 [shape = 'u32[]', space=smem, size = 0x4, offset = 0x4, fixed_abs, tag = 'smem constant byte address 0x4 - core index']
  #allocation1 [shape = 'u32[144,128]{1,0:T(1,128)}', space=vmem, size = 0x12000, scoped, tag = 'internal scratch']
  %s0 = inlined_call_operand.vmem [shape: f32[32,1], index: 0, kind: input, shape index: {}]
  %s1 = inlined_call_operand.vmem [shape: f32[32,1], index: 1, kind: input, shape index: {}]
  %s2 = inlined_call_operand.vmem [shape: bf16[32,32], index: 2, kind: input, shape index: {}]
  %s3 = inlined_call_operand.vmem [shape: bf16[32,32], index: 3, kind: output, shape index: {}]
  %s4 = sld [smem:[#allocation0]]
  $region22: #{conv_stem_forward.7} parent=0
    _
  %s6 = ssub.s32 1, %s4
  %s7 = scalar_select 0, %s6, %s4
  // Predicated region
  $region2: #{conv_stem_forward.7} parent=0 // pred_check
    _
  $region3: #{conv_stem_forward.7} parent=0 // pred_check_branch
    %9 = sbr.rel (0) target = $region5
  $region4: #{conv_stem_forward.7} parent=0 // pred_region
    _
  $region5: #{conv_stem_forward.7} parent=0 // pred_fallthru
    _
  // Predicated region
  $region6: #{conv_stem_forward.7} parent=0 // pred_check
    _
  $region7: #{conv_stem_forward.7} parent=0 // pred_check_branch
    %11 = sbr.rel (0) target = $region9
  $region8: #{conv_stem_forward.7} parent=0 // pred_region
    _
  $region9: #{conv_stem_forward.7} parent=0 // pred_fallthru
    _
  // Predicated region
  $region10: #{conv_stem_forward.7} parent=0 // pred_check
    _
  $region11: #{conv_stem_forward.7} parent=0 // pred_check_branch
    %13 = sbr.rel (0) target = $region13
  $region12: #{conv_stem_forward.7} parent=0 // pred_region
    _
  $region13: #{conv_stem_forward.7} parent=0 // pred_fallthru
    _
  %v14 = vld [vmem:[%s2] sm:$0xf]
  %v15 = vld [vmem:[%s2 + $0x4] sm:$0xf]
  %v16 = vld [vmem:[%s2 + $0x8] sm:$0xf]
  %v17 = vld [vmem:[%s2 + $0xc] sm:$0xf]
  %v18 = vunpack.c.l.bf16 %v14
  %v19 = vunpack.c.l.bf16 %v15
  %v20 = vunpack.c.l.bf16 %v16
  %v21 = vunpack.c.l.bf16 %v17
  %v22 = vld [vmem:[%s0] sm:$0xff]
  %v23 = vld [vmem:[%s0 + $0x8] sm:$0xff]
  %v24 = vld [vmem:[%s0 + $0x10] sm:$0xff]
  %v25 = vld [vmem:[%s0 + $0x18] sm:$0xff]
  %27 = vset.pattern.permute.xlu0 0
  %28 = vperm.xlu0 %27, %v22
  %v29 = vpop.permute.xlu0 %28
  %32 = vset.pattern.permute.xlu0 0
  %33 = vperm.xlu0 %32, %v23
  %v34 = vpop.permute.xlu0 %33
  %37 = vset.pattern.permute.xlu0 0
  %38 = vperm.xlu0 %37, %v24
  %v39 = vpop.permute.xlu0 %38
  %42 = vset.pattern.permute.xlu0 0
  %43 = vperm.xlu0 %42, %v25
  %v44 = vpop.permute.xlu0 %43
  %v46 = vmul.f32 %v18, %v29
  %v47 = vmul.f32 %v19, %v34
  %v48 = vmul.f32 %v20, %v39
  %v49 = vmul.f32 %v21, %v44
  %v50 = vld [vmem:[%s1] sm:$0xff]
  %v51 = vld [vmem:[%s1 + $0x8] sm:$0xff]
  %v52 = vld [vmem:[%s1 + $0x10] sm:$0xff]
  %v53 = vld [vmem:[%s1 + $0x18] sm:$0xff]
  %55 = vset.pattern.permute.xlu0 0
  %56 = vperm.xlu0 %55, %v50
  %v57 = vpop.permute.xlu0 %56
  %60 = vset.pattern.permute.xlu0 0
  %61 = vperm.xlu0 %60, %v51
  %v62 = vpop.permute.xlu0 %61
  %65 = vset.pattern.permute.xlu0 0
  %66 = vperm.xlu0 %65, %v52
  %v67 = vpop.permute.xlu0 %66
  %70 = vset.pattern.permute.xlu0 0
  %71 = vperm.xlu0 %70, %v53
  %v72 = vpop.permute.xlu0 %71
  %v74 = vadd.f32 %v46, %v57
  %v75 = vadd.f32 %v47, %v62
  %v76 = vadd.f32 %v48, %v67
  %v77 = vadd.f32 %v49, %v72
  %v78 = vmax.f32 %v74, 0.0
  %v79 = vmax.f32 %v75, 0.0
  %v80 = vmax.f32 %v76, 0.0
  %v81 = vmax.f32 %v77, 0.0
  %v82 = vpack.c.bf16 %v79, %v78
  %v83 = vpack.c.bf16 %v81, %v80
  %v86 = vunpack.c.l.b16 %v82
  %v87 = vunpack.c.h.b16 %v82
  %v88 = vunpack.c.l.b16 %v83
  %v89 = vunpack.c.h.b16 %v83
  %v90 = vpack.c.b16 %v86, %v86
  %v91 = vpack.c.b16 %v87, %v87
  %v92 = vpack.c.b16 %v88, %v88
  %v93 = vpack.c.b16 %v89, %v89
  %vm98 = vcmask 257024
  %99 = vst.msk [vmem:[%s3] sm:$0xf] %vm98, %v90
  %100 = vst.msk [vmem:[%s3 + $0x4] sm:$0xf] %vm98, %v91
  %101 = vst.msk [vmem:[%s3 + $0x8] sm:$0xf] %vm98, %v92
  %102 = vst.msk [vmem:[%s3 + $0xc] sm:$0xf] %vm98, %v93
  // Predicated region
  $region14: #{conv_stem_forward.7} parent=0 // pred_check
    _
  $region15: #{conv_stem_forward.7} parent=0 // pred_check_branch
    %104 = sbr.rel (0) target = $region17
  $region16: #{conv_stem_forward.7} parent=0 // pred_region
    _
  $region17: #{conv_stem_forward.7} parent=0 // pred_fallthru
    _
  // Predicated region
  $region18: #{conv_stem_forward.7} parent=0 // pred_check
    _
  $region19: #{conv_stem_forward.7} parent=0 // pred_check_branch
    %106 = sbr.rel (0) target = $region21
  $region20: #{conv_stem_forward.7} parent=0 // pred_region
    _
  $region21: #{conv_stem_forward.7} parent=0 // pred_fallthru
    _

</llo_original>
